<compile_context>
chip_gen: v7x
topology: tpu7x:2x2x1
jax: 0.10.0
libtpu: 0.0.40
codegen_flags: <defaults>
</compile_context>

<pallas_src>
import functools

import jax
import jax.numpy as jnp
from jax.experimental import pallas as pl
from jax.experimental.pallas import tpu as pltpu


def _token_dropout_kernel(x_ref, bits_ref, o_ref, *, thresh, value):
    x = x_ref[...]
    mask = bits_ref[...] < jnp.uint32(thresh)
    fill = jnp.asarray(value, dtype=x.dtype)          # scalar splat, no jnp.full
    o_ref[...] = jnp.where(mask, fill, x)


def token_dropout(x, seed, *, p=0.5, value=0, training=True,
                  lanes=1024, max_block_rows=256):
    """Pallas TokenDropout.

    x:     array of token ids (any shape / dtype).
    seed:  Python int used to derive the dropout mask.
    p:     drop probability (resolution 2^-32).
    value: fill value for dropped tokens.
    """
    if not training or p <= 0.0:
        return x  # eval mode (or p == 0): identity, same as the PyTorch module

    orig_shape = x.shape
    n = x.size
    if n == 0:
        return x

    # ---- flatten to a lane-dense 2-D slab, padded to whole tiles ----------
    rows = pl.cdiv(n, lanes)
    if rows >= max_block_rows:
        block_rows = max_block_rows
    else:
        block_rows = pl.cdiv(rows, 8) * 8            # keep sublane multiple of 8
    rows_padded = pl.cdiv(rows, block_rows) * block_rows
    padded_n = rows_padded * lanes

    x_flat = jnp.ravel(x)
    if padded_n != n:
        x_flat = jnp.pad(x_flat, (0, padded_n - n))
    x2d = x_flat.reshape(rows_padded, lanes)

    # ---- random bits (one draw for the whole array) ------------------------
    key = jax.random.PRNGKey(seed)
    bits = jax.random.bits(key, (rows_padded, lanes), dtype=jnp.uint32)

    # integer threshold: P(bits < thresh) == round(p * 2^32) / 2^32 ~= p
    thresh = min(int(round(float(p) * (1 << 32))), (1 << 32) - 1)

    grid = (rows_padded // block_rows,)
    kernel = functools.partial(_token_dropout_kernel, thresh=thresh, value=value)

    out2d = pl.pallas_call(
        kernel,
        out_shape=jax.ShapeDtypeStruct((rows_padded, lanes), x2d.dtype),
        grid=grid,
        in_specs=[
            pl.BlockSpec((block_rows, lanes), lambda i: (i, 0)),   # x tile
            pl.BlockSpec((block_rows, lanes), lambda i: (i, 0)),   # random bits tile
        ],
        out_specs=pl.BlockSpec((block_rows, lanes), lambda i: (i, 0)),
        compiler_params=pltpu.CompilerParams(
            dimension_semantics=("parallel",)),       # megacore sharding on v7x
    )(x2d, bits)

    return out2d.reshape(-1)[:n].reshape(orig_shape)


if __name__ == "__main__":
    key = jax.random.PRNGKey(0)

    batch, seq = 8, 128
    # Token ids in [1, 1000); value=0 marks "dropped" tokens (e.g. <unk>/pad id).
    x = jax.random.randint(key, (batch, seq), minval=1, maxval=1000, dtype=jnp.int32)

    p = 0.5
    value = 0
    seed = 1234

    y = token_dropout(x, seed, p=p, value=value, training=True)
    y = jax.block_until_ready(y)

    # Basic sanity checks on the forward semantics.
    dropped = jnp.sum(y == value)
    kept_match = jnp.all((y == x) | (y == value))
    assert bool(kept_match), "non-dropped tokens must be unchanged"
    frac = float(dropped) / (batch * seq)
    assert 0.3 < frac < 0.7, f"drop fraction {frac} not near p={p}"

    # Eval mode: identity.
    y_eval = jax.block_until_ready(
        token_dropout(x, seed, p=p, value=value, training=False))
    assert bool(jnp.all(y_eval == x))

    print("KERNEL_OK")
</pallas_src>

<mosaic_0001>
module attributes {stable_mosaic.version = 11 : i64} {
  func.func @_token_dropout_kernel(%arg0: i32, %arg1: memref<8x1024xi32, #tpu.memory_space<vmem>>, %arg2: memref<8x1024xi32, #tpu.memory_space<vmem>>, %arg3: memref<8x1024xi32, #tpu.memory_space<vmem>>) attributes {dimension_semantics = [#tpu.dimension_semantics<parallel>], iteration_bounds = array<i64: 1>, scalar_prefetch = 0 : i64, scratch_operands = 0 : i64, tpu.core_type = #tpu.core_type<tc>, window_params = [{transform_indices = @transform_0, window_bounds = array<i64: 8, 1024>}, {transform_indices = @transform_1, window_bounds = array<i64: 8, 1024>}, {transform_indices = @transform_2, window_bounds = array<i64: 8, 1024>}]} {
    %c0 = arith.constant 0 : index
    %c0_0 = arith.constant 0 : index
    %0 = vector.load %arg1[%c0, %c0_0] : memref<8x1024xi32, #tpu.memory_space<vmem>>, vector<8x1024xi32>
    %c0_1 = arith.constant 0 : index
    %c0_2 = arith.constant 0 : index
    %1 = vector.load %arg2[%c0_1, %c0_2] : memref<8x1024xi32, #tpu.memory_space<vmem>>, vector<8x1024xi32>
    %c-2147483648_i32 = arith.constant -2147483648 : i32
    %2 = vector.broadcast %c-2147483648_i32 : i32 to vector<8x1024xi32>
    %3 = arith.cmpi ult, %1, %2 : vector<8x1024xi32>
    %c0_i32 = arith.constant 0 : i32
    %4 = vector.broadcast %c0_i32 : i32 to vector<8x1024xi32>
    %5 = arith.select %3, %4, %0 : vector<8x1024xi1>, vector<8x1024xi32>
    %c0_3 = arith.constant 0 : index
    %c0_4 = arith.constant 0 : index
    %6 = vector.load %arg3[%c0_3, %c0_4] : memref<8x1024xi32, #tpu.memory_space<vmem>>, vector<8x1024xi32>
    tpu.vector_store %arg3[%c0_3, %c0_4], %5 {strides = array<i32>} : memref<8x1024xi32, #tpu.memory_space<vmem>>, vector<8x1024xi32>,
    return
  }
  func.func @transform_0(%arg0: i32) -> (i32, i32) {
    %c0_i32 = arith.constant 0 : i32
    %c0_i32_0 = arith.constant 0 : i32
    return %arg0, %c0_i32 : i32, i32
  }
  func.func @transform_1(%arg0: i32) -> (i32, i32) {
    %c0_i32 = arith.constant 0 : i32
    %c0_i32_0 = arith.constant 0 : i32
    return %arg0, %c0_i32 : i32, i32
  }
  func.func @transform_2(%arg0: i32) -> (i32, i32) {
    %c0_i32 = arith.constant 0 : i32
    %c0_i32_0 = arith.constant 0 : i32
    return %arg0, %c0_i32 : i32, i32
  }
}

</mosaic_0001>

<llo_original>
// kernel: tpu_custom_call.1
$region0: #{tpu_custom_call.1}
  #allocation0 [shape = 'u32[]', space=smem, size = 0x4, offset = 0x4, fixed_abs, tag = 'smem constant byte address 0x4 - core index']
  #allocation1 [shape = 'u32[144,128]{1,0:T(1,128)}', space=vmem, size = 0x12000, scoped, tag = 'internal scratch']
  %s0 = inlined_call_operand.hbm [shape: s32[8,1024], index: 0, kind: input, shape index: {}]
  %s1 = inlined_call_operand.hbm [shape: u32[8,1024], index: 1, kind: input, shape index: {}]
  %s2 = inlined_call_operand.hbm [shape: s32[8,1024], index: 2, kind: output, shape index: {}]
  %s3 = sld [smem:[#allocation0]]
  $region26: #{tpu_custom_call.1} parent=0
    _
  %s5 = ssub.s32 1, %s3
  %s6 = scalar_select 0, %s5, %s3
  $region1: #{tpu_custom_call.1} parent=0
    #allocation2 [shape = 'u8[32768]{0}', space=vmem, size = 0x8000, scoped, tag = 'input window, operand 0, single buffered']
    #allocation3 [shape = 's32[1]{0}', space=sflag, size = 0x4, scoped, tag = 'scoped memory for tpu_custom_call.1']
    #allocation4 [shape = 's32[1]{0}', space=sflag, size = 0x4, scoped, tag = 'scoped memory for tpu_custom_call.1']
    #allocation5 [shape = 'u8[32768]{0}', space=vmem, size = 0x8000, scoped, tag = 'input window, operand 1, single buffered']
    #allocation6 [shape = 's32[1]{0}', space=sflag, size = 0x4, scoped, tag = 'scoped memory for tpu_custom_call.1']
    #allocation7 [shape = 'u8[32768]{0}', space=vmem, size = 0x8000, scoped, tag = 'output window, operand 0, single buffered']
    %7 = vsyncpa [#allocation3], 0
    %8 = vsyncpa [#allocation6], 0
    %9 = vsyncpa [#allocation4], 0
    // Predicated region
    $region2: #{tpu_custom_call.1} parent=1 // pred_check
      _
    $region3: #{tpu_custom_call.1} parent=1 // pred_check_branch
      %11 = sbr.rel (0) target = $region5
    $region4: #{tpu_custom_call.1} parent=1 // pred_region
      %s13 = ssub.s32 1024, 1024
      %14 = vsyncadd [#allocation3], %s13
      %s16 = sshll.u32 [#allocation2], 4
      %s17 = int_to_ptr.vmem [resolvable:$true] %s16
      %19 = dma.hbm_to_vmem [thread:$0]  %s0, 1024, %s17, [#allocation3]
    $region5: #{tpu_custom_call.1} parent=1 // pred_fallthru
      _
    // Predicated region
    $region6: #{tpu_custom_call.1} parent=1 // pred_check
      _
    $region7: #{tpu_custom_call.1} parent=1 // pred_check_branch
      %21 = sbr.rel (0) target = $region9
    $region8: #{tpu_custom_call.1} parent=1 // pred_region
      %s23 = ssub.s32 1024, 1024
      %24 = vsyncadd [#allocation6], %s23
      %s26 = sshll.u32 [#allocation5], 4
      %s27 = int_to_ptr.vmem [resolvable:$true] %s26
      %29 = dma.hbm_to_vmem [thread:$0]  %s1, 1024, %s27, [#allocation6]
    $region9: #{tpu_custom_call.1} parent=1 // pred_fallthru
      _
    // Predicated region
    $region10: #{tpu_custom_call.1} parent=1 // pred_check
      _
    $region11: #{tpu_custom_call.1} parent=1 // pred_check_branch
      %31 = sbr.rel (0) target = $region13
    $region12: #{tpu_custom_call.1} parent=1 // pred_region
      %32 = dma.done [#allocation3], 1024
    $region13: #{tpu_custom_call.1} parent=1 // pred_fallthru
      _
    // Predicated region
    $region14: #{tpu_custom_call.1} parent=1 // pred_check
      _
    $region15: #{tpu_custom_call.1} parent=1 // pred_check_branch
      %34 = sbr.rel (0) target = $region17
    $region16: #{tpu_custom_call.1} parent=1 // pred_region
      %35 = dma.done [#allocation6], 1024
    $region17: #{tpu_custom_call.1} parent=1 // pred_fallthru
      _
    %v36 = vld [vmem:[#allocation2] sm:$0xff]
    %v37 = vld [vmem:[#allocation2 + $0x8] sm:$0xff]
    %v38 = vld [vmem:[#allocation2 + $0x10] sm:$0xff]
    %v39 = vld [vmem:[#allocation2 + $0x18] sm:$0xff]
    %v40 = vld [vmem:[#allocation2 + $0x20] sm:$0xff]
    %v41 = vld [vmem:[#allocation2 + $0x28] sm:$0xff]
    %v42 = vld [vmem:[#allocation2 + $0x30] sm:$0xff]
    %v43 = vld [vmem:[#allocation2 + $0x38] sm:$0xff]
    %v44 = vld [vmem:[#allocation5] sm:$0xff]
    %v45 = vld [vmem:[#allocation5 + $0x8] sm:$0xff]
    %v46 = vld [vmem:[#allocation5 + $0x10] sm:$0xff]
    %v47 = vld [vmem:[#allocation5 + $0x18] sm:$0xff]
    %v48 = vld [vmem:[#allocation5 + $0x20] sm:$0xff]
    %v49 = vld [vmem:[#allocation5 + $0x28] sm:$0xff]
    %v50 = vld [vmem:[#allocation5 + $0x30] sm:$0xff]
    %v51 = vld [vmem:[#allocation5 + $0x38] sm:$0xff]
    %vm52 = vcmp.lt.u32.totalorder %v44, 2147483648
    %vm53 = vcmp.lt.u32.totalorder %v45, 2147483648
    %vm54 = vcmp.lt.u32.totalorder %v46, 2147483648
    %vm55 = vcmp.lt.u32.totalorder %v47, 2147483648
    %vm56 = vcmp.lt.u32.totalorder %v48, 2147483648
    %vm57 = vcmp.lt.u32.totalorder %v49, 2147483648
    %vm58 = vcmp.lt.u32.totalorder %v50, 2147483648
    %vm59 = vcmp.lt.u32.totalorder %v51, 2147483648
    %v60 = vsel %vm52, 0, %v36
    %v61 = vsel %vm53, 0, %v37
    %v62 = vsel %vm54, 0, %v38
    %v63 = vsel %vm55, 0, %v39
    %v64 = vsel %vm56, 0, %v40
    %v65 = vsel %vm57, 0, %v41
    %v66 = vsel %vm58, 0, %v42
    %v67 = vsel %vm59, 0, %v43
    %68 = vst [vmem:[#allocation7] sm:$0xff] %v60
    %69 = vst [vmem:[#allocation7 + $0x8] sm:$0xff] %v61
    %70 = vst [vmem:[#allocation7 + $0x10] sm:$0xff] %v62
    %71 = vst [vmem:[#allocation7 + $0x18] sm:$0xff] %v63
    %72 = vst [vmem:[#allocation7 + $0x20] sm:$0xff] %v64
    %73 = vst [vmem:[#allocation7 + $0x28] sm:$0xff] %v65
    %74 = vst [vmem:[#allocation7 + $0x30] sm:$0xff] %v66
    %75 = vst [vmem:[#allocation7 + $0x38] sm:$0xff] %v67
    // Predicated region
    $region18: #{tpu_custom_call.1} parent=1 // pred_check
      _
    $region19: #{tpu_custom_call.1} parent=1 // pred_check_branch
      %77 = sbr.rel (0) target = $region21
    $region20: #{tpu_custom_call.1} parent=1 // pred_region
      %s79 = ssub.s32 1024, 1024
      %80 = vsyncadd [#allocation4], %s79
      %s82 = sshll.u32 [#allocation7], 4
      %s83 = int_to_ptr.vmem [resolvable:$true] %s82
      %85 = dma.vmem_to_hbm [thread:$0]  %s83, 1024, %s2, [#allocation4]
    $region21: #{tpu_custom_call.1} parent=1 // pred_fallthru
      _
    // Predicated region
    $region22: #{tpu_custom_call.1} parent=1 // pred_check
      _
    $region23: #{tpu_custom_call.1} parent=1 // pred_check_branch
      %87 = sbr.rel (0) target = $region25
    $region24: #{tpu_custom_call.1} parent=1 // pred_region
      %88 = dma.done [#allocation4], 1024
    $region25: #{tpu_custom_call.1} parent=1 // pred_fallthru
      _
    %89 = vsyncpa [#allocation3], 1
    %90 = vsyncpa [#allocation6], 1
    %91 = vsyncpa [#allocation4], 1

</llo_original>
